<compile_context>
chip_gen: v5e
topology: v5e:2x2
jax: 0.10.0
libtpu: 0.0.40
codegen_flags: <defaults>
</compile_context>

<pallas_src>
from functools import partial

import jax
import jax.numpy as jnp
from jax.experimental import pallas as pl
from jax.experimental.pallas import tpu as pltpu


def lora_block_kernel(p_ref, w1_ref, w2_ref, b2_ref, o_ref):
    # p_ref : (TM, KC)   bf16 im2col rows for this tile (dominant HBM stream)
    # w1_ref: (KC, Rp)   bf16 spatial conv as a GEMM; rank padded to 128 lanes
    # w2_ref: (Rp, CP)   f32  1x1 conv weight (tiny, grid-resident)
    # b2_ref: (1, CP)    f32  fused bias  b2' = b1 @ w2 + b2
    # o_ref : (TM, CP)   f32  output tile (CP == Cout unless Cout >= 128)
    h = jnp.dot(p_ref[...], w1_ref[...], preferred_element_type=jnp.float32)
    o = jnp.dot(h, w2_ref[...], preferred_element_type=jnp.float32) + b2_ref[...]
    o_ref[...] = o.astype(o_ref.dtype)


def _im2col_nhwc(x_nhwc, K):
    """(B,H,W,C) -> (B*H*W, K*K*C) patches for a stride-1 'same' conv."""
    B, H, W, C = x_nhwc.shape
    if K == 1:
        return x_nhwc.reshape(B * H * W, C)
    p = K // 2
    xp = jnp.pad(x_nhwc, ((0, 0), (p, p), (p, p), (0, 0)))
    taps = [xp[:, i:i + H, j:j + W, :] for i in range(K) for j in range(K)]
    return jnp.concatenate(taps, axis=-1).reshape(B * H * W, K * K * C)


@partial(jax.jit, static_argnames=("block_rows",))
def lora_block(x_nchw, wW, bW, wM, bM, *, block_rows=1024):
    """Pallas forward of LoraBlock.

    x_nchw: (B, Cin, H, W) f32
    wW:     (rank, Cin, K, K)  first conv weight (PyTorch OIHW layout)
    bW:     (rank,)
    wM:     (Cout, rank, 1, 1) 1x1 conv weight
    bM:     (Cout,)
    returns (B, Cout, H, W) f32
    """
    B, Cin, H, W = x_nchw.shape
    R, _, K, _ = wW.shape
    Cout = wM.shape[0]

    # ---- wrapper-side layout plumbing (no arithmetic) ----------------------
    # NOTE: if the surrounding model carries NHWC activations, drop these two
    # transposes (full HBM round trips handled by XLA) -- review item #9.
    x_nhwc = jnp.transpose(x_nchw, (0, 2, 3, 1)).astype(jnp.bfloat16)
    patches = _im2col_nhwc(x_nhwc, K)                      # (M, K*K*Cin) bf16
    M, KC = patches.shape

    # Rank padded to a lane multiple: intermediate h is lane-dense.
    Rp = pl.cdiv(R, 128) * 128
    # Adaptive output-channel padding: only pad when Cout is already large.
    CP = pl.cdiv(Cout, 128) * 128 if Cout >= 128 else Cout

    # conv weight OIHW -> (K*K*Cin, R) in the same tap order as the patches,
    # zero-padded along rank; bf16 to match the patches stream.
    w1 = jnp.zeros((KC, Rp), jnp.float32).at[:, :R].set(
        jnp.transpose(wW, (2, 3, 1, 0)).reshape(KC, R)).astype(jnp.bfloat16)

    # 1x1 conv weight -> (Rp, CP) f32 (tiny, resident; avoids mixed-dtype dot).
    w2_mat = wM.reshape(Cout, R).T                          # (R, Cout)
    w2 = jnp.zeros((Rp, CP), jnp.float32).at[:R, :Cout].set(w2_mat)

    # Fold first bias into second: b2' = bW @ w2 + bM (exact).
    b2_eff = bW.reshape(1, R) @ w2_mat + bM.reshape(1, Cout)
    b2 = jnp.zeros((1, CP), jnp.float32).at[:, :Cout].set(b2_eff)

    # ---- row tiling: size TM for VMEM on every TPU generation --------------
    in_row_bytes = KC * 2                # bf16 patches
    out_row_bytes = CP * 4               # f32 output
    h_row_bytes = Rp * 4                 # f32 intermediate (not pipelined)
    per_row = 2 * (in_row_bytes + out_row_bytes) + h_row_bytes
    vmem_tile_budget = 20 * 2 ** 20      # conservative: fits v5e/v6e/v7x
    tm_cap = max(8, (vmem_tile_budget // per_row) // 8 * 8)

    M8 = ((M + 7) // 8) * 8
    TM = min(block_rows, tm_cap, M8)
    # Keep >= ~8 grid steps when there is enough work (v7x megacore sharding
    # + real double-buffering), but never shrink tiles below 512 rows.
    if M8 >= 8 * 512:
        TM = min(TM, max(512, ((M8 // 8 + 7) // 8) * 8))
    TM = max(8, TM)

    Mp = pl.cdiv(M, TM) * TM
    if Mp != M:
        patches = jnp.pad(patches, ((0, Mp - M), (0, 0)))
    grid = (Mp // TM,)

    weight_bytes = KC * Rp * 2 + Rp * CP * 4 + CP * 4
    vmem_need = TM * per_row + 2 * weight_bytes
    vmem_limit = int(min(64 * 2 ** 20, max(32 * 2 ** 20, 2 * vmem_need)))

    out = pl.pallas_call(
        lora_block_kernel,
        out_shape=jax.ShapeDtypeStruct((Mp, CP), jnp.float32),
        grid_spec=pltpu.PrefetchScalarGridSpec(
            num_scalar_prefetch=0,
            grid=grid,
            in_specs=[
                pl.BlockSpec((TM, KC), lambda i: (i, 0)),
                pl.BlockSpec((KC, Rp), lambda i: (0, 0)),   # resident weights
                pl.BlockSpec((Rp, CP), lambda i: (0, 0)),
                pl.BlockSpec((1, CP), lambda i: (0, 0)),
            ],
            out_specs=pl.BlockSpec((TM, CP), lambda i: (i, 0)),
        ),
        compiler_params=pltpu.CompilerParams(
            dimension_semantics=("parallel",),
            vmem_limit_bytes=vmem_limit),
    )(patches, w1, w2, b2)

    out = out[:M, :Cout].reshape(B, H, W, Cout)
    return jnp.transpose(out, (0, 3, 1, 2)).astype(jnp.float32)   # back to NCHW


def reference(x_nchw, wW, bW, wM, bM):
    """Pure-JAX reference with PyTorch Conv2d semantics (cross-correlation)."""
    K = wW.shape[-1]
    p = K // 2
    y = jax.lax.conv_general_dilated(
        x_nchw, wW, window_strides=(1, 1), padding=((p, p), (p, p)),
        dimension_numbers=('NCHW', 'OIHW', 'NCHW'),
        precision=jax.lax.Precision.HIGHEST)
    y = y + bW[None, :, None, None]
    z = jax.lax.conv_general_dilated(
        y, wM, window_strides=(1, 1), padding='VALID',
        dimension_numbers=('NCHW', 'OIHW', 'NCHW'),
        precision=jax.lax.Precision.HIGHEST)
    return z + bM[None, :, None, None]


if __name__ == "__main__":
    B, Cin, H, W = 2, 4, 16, 16
    Cout, rank = 4, 6
    key = jax.random.PRNGKey(0)

    # module default kernel_size=1, plus kernel_size=3 to exercise the
    # 'same'-padding spatial-conv path
    for K in (1, 3):
        ks = jax.random.split(jax.random.fold_in(key, K), 5)
        x = jax.random.normal(ks[0], (B, Cin, H, W), jnp.float32)
        wW = 0.2 * jax.random.normal(ks[1], (rank, Cin, K, K), jnp.float32)
        bW = 0.2 * jax.random.normal(ks[2], (rank,), jnp.float32)
        wM = 0.2 * jax.random.normal(ks[3], (Cout, rank, 1, 1), jnp.float32)
        bM = 0.2 * jax.random.normal(ks[4], (Cout,), jnp.float32)

        out = jax.block_until_ready(lora_block(x, wW, bW, wM, bM))
        ref = jax.block_until_ready(reference(x, wW, bW, wM, bM))
        assert out.shape == (B, Cout, H, W)
        # bf16 input stream -> looser tolerance than a pure-f32 pipeline.
        assert jnp.allclose(out, ref, atol=5e-2, rtol=5e-2), f"mismatch K={K}"

    print("KERNEL_OK")
</pallas_src>

<mosaic_0001>
module attributes {stable_mosaic.version = 11 : i64} {
  func.func @lora_block_kernel(%arg0: i32, %arg1: memref<512x4xbf16, #tpu.memory_space<vmem>>, %arg2: memref<4x128xbf16, #tpu.memory_space<vmem>>, %arg3: memref<128x4xf32, #tpu.memory_space<vmem>>, %arg4: memref<1x4xf32, #tpu.memory_space<vmem>>, %arg5: memref<512x4xf32, #tpu.memory_space<vmem>>) attributes {dimension_semantics = [#tpu.dimension_semantics<parallel>], iteration_bounds = array<i64: 1>, scalar_prefetch = 0 : i64, scratch_operands = 0 : i64, tpu.core_type = #tpu.core_type<tc>, window_params = [{transform_indices = @transform_0, window_bounds = array<i64: 512, 4>}, {pipeline_mode = #tpu.pipeline_mode<synchronous>, transform_indices = @transform_1, window_bounds = array<i64: 4, 128>}, {pipeline_mode = #tpu.pipeline_mode<synchronous>, transform_indices = @transform_2, window_bounds = array<i64: 128, 4>}, {pipeline_mode = #tpu.pipeline_mode<synchronous>, transform_indices = @transform_3, window_bounds = array<i64: 1, 4>}, {transform_indices = @transform_4, window_bounds = array<i64: 512, 4>}]} {
    %c0 = arith.constant 0 : index
    %c0_0 = arith.constant 0 : index
    %0 = vector.load %arg1[%c0, %c0_0] : memref<512x4xbf16, #tpu.memory_space<vmem>>, vector<512x4xbf16>
    %c0_1 = arith.constant 0 : index
    %c0_2 = arith.constant 0 : index
    %1 = vector.load %arg2[%c0_1, %c0_2] : memref<4x128xbf16, #tpu.memory_space<vmem>>, vector<4x128xbf16>
    %cst = arith.constant dense<0.000000e+00> : vector<512x128xf32>
    %2 = tpu.matmul %0, %1, %cst {dimension_numbers = #tpu.dot_dimension_numbers<[1], [0], [0], [1], [0, 0, 1, 1], [], []>} : vector<512x4xbf16>, vector<4x128xbf16>, vector<512x128xf32> -> vector<512x128xf32>
    %c0_3 = arith.constant 0 : index
    %c0_4 = arith.constant 0 : index
    %3 = vector.load %arg3[%c0_3, %c0_4] : memref<128x4xf32, #tpu.memory_space<vmem>>, vector<128x4xf32>
    %cst_5 = arith.constant dense<0.000000e+00> : vector<512x4xf32>
    %4 = tpu.matmul %2, %3, %cst_5 {dimension_numbers = #tpu.dot_dimension_numbers<[1], [0], [0], [1], [0, 0, 1, 1], [], []>} : vector<512x128xf32>, vector<128x4xf32>, vector<512x4xf32> -> vector<512x4xf32>
    %c0_6 = arith.constant 0 : index
    %c0_7 = arith.constant 0 : index
    %5 = vector.load %arg4[%c0_6, %c0_7] : memref<1x4xf32, #tpu.memory_space<vmem>>, vector<1x4xf32>
    %6 = vector.broadcast %5 : vector<1x4xf32> to vector<512x4xf32>
    %7 = arith.addf %4, %6 : vector<512x4xf32>
    %c0_8 = arith.constant 0 : index
    %c0_9 = arith.constant 0 : index
    %8 = vector.load %arg5[%c0_8, %c0_9] : memref<512x4xf32, #tpu.memory_space<vmem>>, vector<512x4xf32>
    tpu.vector_store %arg5[%c0_8, %c0_9], %7 {strides = array<i32>} : memref<512x4xf32, #tpu.memory_space<vmem>>, vector<512x4xf32>,
    return
  }
  func.func @transform_0(%arg0: i32) -> (i32, i32) {
    %c0_i32 = arith.constant 0 : i32
    %c0_i32_0 = arith.constant 0 : i32
    return %arg0, %c0_i32 : i32, i32
  }
  func.func @transform_1(%arg0: i32) -> (i32, i32) {
    %c0_i32 = arith.constant 0 : i32
    %c0_i32_0 = arith.constant 0 : i32
    %c0_i32_1 = arith.constant 0 : i32
    return %c0_i32, %c0_i32_0 : i32, i32
  }
  func.func @transform_2(%arg0: i32) -> (i32, i32) {
    %c0_i32 = arith.constant 0 : i32
    %c0_i32_0 = arith.constant 0 : i32
    %c0_i32_1 = arith.constant 0 : i32
    return %c0_i32, %c0_i32_0 : i32, i32
  }
  func.func @transform_3(%arg0: i32) -> (i32, i32) {
    %c0_i32 = arith.constant 0 : i32
    %c0_i32_0 = arith.constant 0 : i32
    %c0_i32_1 = arith.constant 0 : i32
    return %c0_i32, %c0_i32_0 : i32, i32
  }
  func.func @transform_4(%arg0: i32) -> (i32, i32) {
    %c0_i32 = arith.constant 0 : i32
    %c0_i32_0 = arith.constant 0 : i32
    return %arg0, %c0_i32 : i32, i32
  }
}

</mosaic_0001>

<llo_original>
// kernel: lora_block.1
$region0: #{lora_block.1}
  #allocation0 [shape = 'u32[]', space=smem, size = 0x4, offset = 0x4, fixed_abs, tag = 'smem constant byte address 0x4 - core index']
  #allocation1 [shape = 'u32[72,128]{1,0:T(1,128)}', space=vmem, size = 0x9000, scoped, tag = 'internal scratch']
  %s0 = inlined_call_operand.vmem [shape: bf16[512,4], index: 0, kind: input, shape index: {}]
  %s1 = inlined_call_operand.vmem [shape: bf16[4,128], index: 1, kind: input, shape index: {}]
  %s2 = inlined_call_operand.vmem [shape: f32[128,4], index: 2, kind: input, shape index: {}]
  %s3 = inlined_call_operand.vmem [shape: f32[1,4], index: 3, kind: input, shape index: {}]
  %s4 = inlined_call_operand.vmem [shape: f32[512,4], index: 4, kind: output, shape index: {}]
  %s5 = sld [smem:[#allocation0]]
  $region26: #{lora_block.1} parent=0
    _
  %s7 = ssub.s32 1, %s5
  %s8 = scalar_select 0, %s7, %s5
  // Predicated region
  $region2: #{lora_block.1} parent=0 // pred_check
    _
  $region3: #{lora_block.1} parent=0 // pred_check_branch
    %10 = sbr.rel (0) target = $region5
  $region4: #{lora_block.1} parent=0 // pred_region
    _
  $region5: #{lora_block.1} parent=0 // pred_fallthru
    _
  // Predicated region
  $region6: #{lora_block.1} parent=0 // pred_check
    _
  $region7: #{lora_block.1} parent=0 // pred_check_branch
    %12 = sbr.rel (0) target = $region9
  $region8: #{lora_block.1} parent=0 // pred_region
    _
  $region9: #{lora_block.1} parent=0 // pred_fallthru
    _
  // Predicated region
  $region10: #{lora_block.1} parent=0 // pred_check
    _
  $region11: #{lora_block.1} parent=0 // pred_check_branch
    %14 = sbr.rel (0) target = $region13
  $region12: #{lora_block.1} parent=0 // pred_region
    _
  $region13: #{lora_block.1} parent=0 // pred_fallthru
    _
  // Predicated region
  $region14: #{lora_block.1} parent=0 // pred_check
    _
  $region15: #{lora_block.1} parent=0 // pred_check_branch
    %16 = sbr.rel (0) target = $region17
  $region16: #{lora_block.1} parent=0 // pred_region
    _
  $region17: #{lora_block.1} parent=0 // pred_fallthru
    _
  %v18 = vld [vmem:[%s0] sm:$0xf]
  %v19 = vld [vmem:[%s0 + $0x4] sm:$0xf]
  %v20 = vld [vmem:[%s0 + $0x8] sm:$0xf]
  %v21 = vld [vmem:[%s0 + $0xc] sm:$0xf]
  %v22 = vld [vmem:[%s0 + $0x10] sm:$0xf]
  %v23 = vld [vmem:[%s0 + $0x14] sm:$0xf]
  %v24 = vld [vmem:[%s0 + $0x18] sm:$0xf]
  %v25 = vld [vmem:[%s0 + $0x1c] sm:$0xf]
  %v26 = vld [vmem:[%s0 + $0x20] sm:$0xf]
  %v27 = vld [vmem:[%s0 + $0x24] sm:$0xf]
  %v28 = vld [vmem:[%s0 + $0x28] sm:$0xf]
  %v29 = vld [vmem:[%s0 + $0x2c] sm:$0xf]
  %v30 = vld [vmem:[%s0 + $0x30] sm:$0xf]
  %v31 = vld [vmem:[%s0 + $0x34] sm:$0xf]
  %v32 = vld [vmem:[%s0 + $0x38] sm:$0xf]
  %v33 = vld [vmem:[%s0 + $0x3c] sm:$0xf]
  %v34 = vld [vmem:[%s0 + $0x40] sm:$0xf]
  %v35 = vld [vmem:[%s0 + $0x44] sm:$0xf]
  %v36 = vld [vmem:[%s0 + $0x48] sm:$0xf]
  %v37 = vld [vmem:[%s0 + $0x4c] sm:$0xf]
  %v38 = vld [vmem:[%s0 + $0x50] sm:$0xf]
  %v39 = vld [vmem:[%s0 + $0x54] sm:$0xf]
  %v40 = vld [vmem:[%s0 + $0x58] sm:$0xf]
  %v41 = vld [vmem:[%s0 + $0x5c] sm:$0xf]
  %v42 = vld [vmem:[%s0 + $0x60] sm:$0xf]
  %v43 = vld [vmem:[%s0 + $0x64] sm:$0xf]
  %v44 = vld [vmem:[%s0 + $0x68] sm:$0xf]
  %v45 = vld [vmem:[%s0 + $0x6c] sm:$0xf]
  %v46 = vld [vmem:[%s0 + $0x70] sm:$0xf]
  %v47 = vld [vmem:[%s0 + $0x74] sm:$0xf]
  %v48 = vld [vmem:[%s0 + $0x78] sm:$0xf]
  %v49 = vld [vmem:[%s0 + $0x7c] sm:$0xf]
  %v50 = vld [vmem:[%s0 + $0x80] sm:$0xf]
  %v51 = vld [vmem:[%s0 + $0x84] sm:$0xf]
  %v52 = vld [vmem:[%s0 + $0x88] sm:$0xf]
  %v53 = vld [vmem:[%s0 + $0x8c] sm:$0xf]
  %v54 = vld [vmem:[%s0 + $0x90] sm:$0xf]
  %v55 = vld [vmem:[%s0 + $0x94] sm:$0xf]
  %v56 = vld [vmem:[%s0 + $0x98] sm:$0xf]
  %v57 = vld [vmem:[%s0 + $0x9c] sm:$0xf]
  %v58 = vld [vmem:[%s0 + $0xa0] sm:$0xf]
  %v59 = vld [vmem:[%s0 + $0xa4] sm:$0xf]
  %v60 = vld [vmem:[%s0 + $0xa8] sm:$0xf]
  %v61 = vld [vmem:[%s0 + $0xac] sm:$0xf]
  %v62 = vld [vmem:[%s0 + $0xb0] sm:$0xf]
  %v63 = vld [vmem:[%s0 + $0xb4] sm:$0xf]
  %v64 = vld [vmem:[%s0 + $0xb8] sm:$0xf]
  %v65 = vld [vmem:[%s0 + $0xbc] sm:$0xf]
  %v66 = vld [vmem:[%s0 + $0xc0] sm:$0xf]
  %v67 = vld [vmem:[%s0 + $0xc4] sm:$0xf]
  %v68 = vld [vmem:[%s0 + $0xc8] sm:$0xf]
  %v69 = vld [vmem:[%s0 + $0xcc] sm:$0xf]
  %v70 = vld [vmem:[%s0 + $0xd0] sm:$0xf]
  %v71 = vld [vmem:[%s0 + $0xd4] sm:$0xf]
  %v72 = vld [vmem:[%s0 + $0xd8] sm:$0xf]
  %v73 = vld [vmem:[%s0 + $0xdc] sm:$0xf]
  %v74 = vld [vmem:[%s0 + $0xe0] sm:$0xf]
  %v75 = vld [vmem:[%s0 + $0xe4] sm:$0xf]
  %v76 = vld [vmem:[%s0 + $0xe8] sm:$0xf]
  %v77 = vld [vmem:[%s0 + $0xec] sm:$0xf]
  %v78 = vld [vmem:[%s0 + $0xf0] sm:$0xf]
  %v79 = vld [vmem:[%s0 + $0xf4] sm:$0xf]
  %v80 = vld [vmem:[%s0 + $0xf8] sm:$0xf]
  %v81 = vld [vmem:[%s0 + $0xfc] sm:$0xf]
  %v82 = vld [vmem:[%s1] sm:$0x3]
  %v147 = vunpack.c.l.b16 %v18
  %v148 = vunpack.c.l.b16 %v19
  %v149 = vunpack.c.l.b16 %v20
  %v150 = vunpack.c.l.b16 %v21
  %v151 = vunpack.c.l.b16 %v22
  %v152 = vunpack.c.l.b16 %v23
  %v153 = vunpack.c.l.b16 %v24
  %v154 = vunpack.c.l.b16 %v25
  %v155 = vunpack.c.l.b16 %v26
  %v156 = vunpack.c.l.b16 %v27
  %v157 = vunpack.c.l.b16 %v28
  %v158 = vunpack.c.l.b16 %v29
  %v159 = vunpack.c.l.b16 %v30
  %v160 = vunpack.c.l.b16 %v31
  %v161 = vunpack.c.l.b16 %v32
  %v162 = vunpack.c.l.b16 %v33
  %v163 = vunpack.c.l.b16 %v34
  %v164 = vunpack.c.l.b16 %v35
  %v165 = vunpack.c.l.b16 %v36
  %v166 = vunpack.c.l.b16 %v37
  %v167 = vunpack.c.l.b16 %v38
  %v168 = vunpack.c.l.b16 %v39
  %v169 = vunpack.c.l.b16 %v40
  %v170 = vunpack.c.l.b16 %v41
  %v171 = vunpack.c.l.b16 %v42
  %v172 = vunpack.c.l.b16 %v43
  %v173 = vunpack.c.l.b16 %v44
  %v174 = vunpack.c.l.b16 %v45
  %v175 = vunpack.c.l.b16 %v46
  %v176 = vunpack.c.l.b16 %v47
  %v177 = vunpack.c.l.b16 %v48
  %v178 = vunpack.c.l.b16 %v49
  %v179 = vunpack.c.l.b16 %v50
  %v180 = vunpack.c.l.b16 %v51
  %v181 = vunpack.c.l.b16 %v52
  %v182 = vunpack.c.l.b16 %v53
  %v183 = vunpack.c.l.b16 %v54
  %v184 = vunpack.c.l.b16 %v55
  %v185 = vunpack.c.l.b16 %v56
  %v186 = vunpack.c.l.b16 %v57
  %v187 = vunpack.c.l.b16 %v58
  %v188 = vunpack.c.l.b16 %v59
  %v189 = vunpack.c.l.b16 %v60
  %v190 = vunpack.c.l.b16 %v61
  %v191 = vunpack.c.l.b16 %v62
  %v192 = vunpack.c.l.b16 %v63
  %v193 = vunpack.c.l.b16 %v64
  %v194 = vunpack.c.l.b16 %v65
  %v195 = vunpack.c.l.b16 %v66
  %v196 = vunpack.c.l.b16 %v67
  %v197 = vunpack.c.l.b16 %v68
  %v198 = vunpack.c.l.b16 %v69
  %v199 = vunpack.c.l.b16 %v70
  %v200 = vunpack.c.l.b16 %v71
  %v201 = vunpack.c.l.b16 %v72
  %v202 = vunpack.c.l.b16 %v73
  %v203 = vunpack.c.l.b16 %v74
  %v204 = vunpack.c.l.b16 %v75
  %v205 = vunpack.c.l.b16 %v76
  %v206 = vunpack.c.l.b16 %v77
  %v207 = vunpack.c.l.b16 %v78
  %v208 = vunpack.c.l.b16 %v79
  %v209 = vunpack.c.l.b16 %v80
  %v210 = vunpack.c.l.b16 %v81
  %v211 = vpack.c.b16 %v148, %v147
  %v212 = vpack.c.b16 %v150, %v149
  %v213 = vpack.c.b16 %v152, %v151
  %v214 = vpack.c.b16 %v154, %v153
  %v215 = vpack.c.b16 %v156, %v155
  %v216 = vpack.c.b16 %v158, %v157
  %v217 = vpack.c.b16 %v160, %v159
  %v218 = vpack.c.b16 %v162, %v161
  %v219 = vpack.c.b16 %v164, %v163
  %v220 = vpack.c.b16 %v166, %v165
  %v221 = vpack.c.b16 %v168, %v167
  %v222 = vpack.c.b16 %v170, %v169
  %v223 = vpack.c.b16 %v172, %v171
  %v224 = vpack.c.b16 %v174, %v173
  %v225 = vpack.c.b16 %v176, %v175
  %v226 = vpack.c.b16 %v178, %v177
  %v227 = vpack.c.b16 %v180, %v179
  %v228 = vpack.c.b16 %v182, %v181
  %v229 = vpack.c.b16 %v184, %v183
  %v230 = vpack.c.b16 %v186, %v185
  %v231 = vpack.c.b16 %v188, %v187
  %v232 = vpack.c.b16 %v190, %v189
  %v233 = vpack.c.b16 %v192, %v191
  %v234 = vpack.c.b16 %v194, %v193
  %v235 = vpack.c.b16 %v196, %v195
  %v236 = vpack.c.b16 %v198, %v197
  %v237 = vpack.c.b16 %v200, %v199
  %v238 = vpack.c.b16 %v202, %v201
  %v239 = vpack.c.b16 %v204, %v203
  %v240 = vpack.c.b16 %v206, %v205
  %v241 = vpack.c.b16 %v208, %v207
  %v242 = vpack.c.b16 %v210, %v209
  %vm243 = vcmask 31744
  %v245 = vsel %vm243, %v211, 0
  %v248 = vsel %vm243, %v212, 0
  %v251 = vsel %vm243, %v213, 0
  %v254 = vsel %vm243, %v214, 0
  %v257 = vsel %vm243, %v215, 0
  %v260 = vsel %vm243, %v216, 0
  %v263 = vsel %vm243, %v217, 0
  %v266 = vsel %vm243, %v218, 0
  %v269 = vsel %vm243, %v219, 0
  %v272 = vsel %vm243, %v220, 0
  %v275 = vsel %vm243, %v221, 0
  %v278 = vsel %vm243, %v222, 0
  %v281 = vsel %vm243, %v223, 0
  %v284 = vsel %vm243, %v224, 0
  %v287 = vsel %vm243, %v225, 0
  %v290 = vsel %vm243, %v226, 0
  %v293 = vsel %vm243, %v227, 0
  %v296 = vsel %vm243, %v228, 0
  %v299 = vsel %vm243, %v229, 0
  %v302 = vsel %vm243, %v230, 0
  %v305 = vsel %vm243, %v231, 0
  %v308 = vsel %vm243, %v232, 0
  %v311 = vsel %vm243, %v233, 0
  %v314 = vsel %vm243, %v234, 0
  %v317 = vsel %vm243, %v235, 0
  %v320 = vsel %vm243, %v236, 0
  %v323 = vsel %vm243, %v237, 0
  %v326 = vsel %vm243, %v238, 0
  %v329 = vsel %vm243, %v239, 0
  %v332 = vsel %vm243, %v240, 0
  %v335 = vsel %vm243, %v241, 0
  %v338 = vsel %vm243, %v242, 0
  %vm340 = vcmask 1041408
  %v342 = vsel %vm340, %v82, 0
  %344 = vmatpush.bf16.msra.mxu0 0
  %345 = vmatpush.bf16.msra.mxu0 0
  %346 = vmatpush.bf16.msra.mxu0 0
  %347 = vmatpush.bf16.msra.mxu0 0
  %348 = vmatpush.bf16.msra.mxu0 0
  %349 = vmatpush.bf16.msra.mxu0 0
  %350 = vmatpush.bf16.msra.mxu0 0
  %351 = vmatpush.bf16.msra.mxu0 %v342
  %352 = vmatmul.bf16.gmra.mxu0 %v245
  %v353 = vpop.f32.mrf.mxu0
  %v354 = vadd.f32 0.0, %v353
  %v355 = vpop.f32.mrf.mxu0
  %v356 = vadd.f32 0.0, %v355
  %357 = vmatmul.bf16.gmra.mxu0 %v248
  %v358 = vpop.f32.mrf.mxu0
  %v359 = vadd.f32 0.0, %v358
  %v360 = vpop.f32.mrf.mxu0
  %v361 = vadd.f32 0.0, %v360
  %362 = vmatmul.bf16.gmra.mxu0 %v251
  %v363 = vpop.f32.mrf.mxu0
  %v364 = vadd.f32 0.0, %v363
  %v365 = vpop.f32.mrf.mxu0
  %v366 = vadd.f32 0.0, %v365
  %367 = vmatmul.bf16.gmra.mxu0 %v254
  %v368 = vpop.f32.mrf.mxu0
  %v369 = vadd.f32 0.0, %v368
  %v370 = vpop.f32.mrf.mxu0
  %v371 = vadd.f32 0.0, %v370
  %372 = vmatmul.bf16.gmra.mxu0 %v257
  %v373 = vpop.f32.mrf.mxu0
  %v374 = vadd.f32 0.0, %v373
  %v375 = vpop.f32.mrf.mxu0
  %v376 = vadd.f32 0.0, %v375
  %377 = vmatmul.bf16.gmra.mxu0 %v260
  %v378 = vpop.f32.mrf.mxu0
  %v379 = vadd.f32 0.0, %v378
  %v380 = vpop.f32.mrf.mxu0
  %v381 = vadd.f32 0.0, %v380
  %382 = vmatmul.bf16.gmra.mxu0 %v263
  %v383 = vpop.f32.mrf.mxu0
  %v384 = vadd.f32 0.0, %v383
  %v385 = vpop.f32.mrf.mxu0
  %v386 = vadd.f32 0.0, %v385
  %387 = vmatmul.bf16.gmra.mxu0 %v266
  %v388 = vpop.f32.mrf.mxu0
  %v389 = vadd.f32 0.0, %v388
  %v390 = vpop.f32.mrf.mxu0
  %v391 = vadd.f32 0.0, %v390
  %392 = vmatmul.bf16.gmra.mxu0 %v269
  %v393 = vpop.f32.mrf.mxu0
  %v394 = vadd.f32 0.0, %v393
  %v395 = vpop.f32.mrf.mxu0
  %v396 = vadd.f32 0.0, %v395
  %397 = vmatmul.bf16.gmra.mxu0 %v272
  %v398 = vpop.f32.mrf.mxu0
  %v399 = vadd.f32 0.0, %v398
  %v400 = vpop.f32.mrf.mxu0
  %v401 = vadd.f32 0.0, %v400
  %402 = vmatmul.bf16.gmra.mxu0 %v275
  %v403 = vpop.f32.mrf.mxu0
  %v404 = vadd.f32 0.0, %v403
  %v405 = vpop.f32.mrf.mxu0
  %v406 = vadd.f32 0.0, %v405
  %407 = vmatmul.bf16.gmra.mxu0 %v278
  %v408 = vpop.f32.mrf.mxu0
  %v409 = vadd.f32 0.0, %v408
  %v410 = vpop.f32.mrf.mxu0
  %v411 = vadd.f32 0.0, %v410
  %412 = vmatmul.bf16.gmra.mxu0 %v281
  %v413 = vpop.f32.mrf.mxu0
  %v414 = vadd.f32 0.0, %v413
  %v415 = vpop.f32.mrf.mxu0
  %v416 = vadd.f32 0.0, %v415
  %417 = vmatmul.bf16.gmra.mxu0 %v284
  %v418 = vpop.f32.mrf.mxu0
  %v419 = vadd.f32 0.0, %v418
  %v420 = vpop.f32.mrf.mxu0
  %v421 = vadd.f32 0.0, %v420
  %422 = vmatmul.bf16.gmra.mxu0 %v287
  %v423 = vpop.f32.mrf.mxu0
  %v424 = vadd.f32 0.0, %v423
  %v425 = vpop.f32.mrf.mxu0
  %v426 = vadd.f32 0.0, %v425
  %427 = vmatmul.bf16.gmra.mxu0 %v290
  %v428 = vpop.f32.mrf.mxu0
  %v429 = vadd.f32 0.0, %v428
  %v430 = vpop.f32.mrf.mxu0
  %v431 = vadd.f32 0.0, %v430
  %432 = vmatmul.bf16.gmra.mxu0 %v293
  %v433 = vpop.f32.mrf.mxu0
  %v434 = vadd.f32 0.0, %v433
  %v435 = vpop.f32.mrf.mxu0
  %v436 = vadd.f32 0.0, %v435
  %437 = vmatmul.bf16.gmra.mxu0 %v296
  %v438 = vpop.f32.mrf.mxu0
  %v439 = vadd.f32 0.0, %v438
  %v440 = vpop.f32.mrf.mxu0
  %v441 = vadd.f32 0.0, %v440
  %442 = vmatmul.bf16.gmra.mxu0 %v299
  %v443 = vpop.f32.mrf.mxu0
  %v444 = vadd.f32 0.0, %v443
  %v445 = vpop.f32.mrf.mxu0
  %v446 = vadd.f32 0.0, %v445
  %447 = vmatmul.bf16.gmra.mxu0 %v302
  %v448 = vpop.f32.mrf.mxu0
  %v449 = vadd.f32 0.0, %v448
  %v450 = vpop.f32.mrf.mxu0
  %v451 = vadd.f32 0.0, %v450
  %452 = vmatmul.bf16.gmra.mxu0 %v305
  %v453 = vpop.f32.mrf.mxu0
  %v454 = vadd.f32 0.0, %v453
  %v455 = vpop.f32.mrf.mxu0
  %v456 = vadd.f32 0.0, %v455
  %457 = vmatmul.bf16.gmra.mxu0 %v308
  %v458 = vpop.f32.mrf.mxu0
  %v459 = vadd.f32 0.0, %v458
  %v460 = vpop.f32.mrf.mxu0
  %v461 = vadd.f32 0.0, %v460
  %462 = vmatmul.bf16.gmra.mxu0 %v311
  %v463 = vpop.f32.mrf.mxu0
  %v464 = vadd.f32 0.0, %v463
  %v465 = vpop.f32.mrf.mxu0
  %v466 = vadd.f32 0.0, %v465
  %467 = vmatmul.bf16.gmra.mxu0 %v314
  %v468 = vpop.f32.mrf.mxu0
  %v469 = vadd.f32 0.0, %v468
  %v470 = vpop.f32.mrf.mxu0
  %v471 = vadd.f32 0.0, %v470
  %472 = vmatmul.bf16.gmra.mxu0 %v317
  %v473 = vpop.f32.mrf.mxu0
  %v474 = vadd.f32 0.0, %v473
  %v475 = vpop.f32.mrf.mxu0
  %v476 = vadd.f32 0.0, %v475
  %477 = vmatmul.bf16.gmra.mxu0 %v320
  %v478 = vpop.f32.mrf.mxu0
  %v479 = vadd.f32 0.0, %v478
  %v480 = vpop.f32.mrf.mxu0
  %v481 = vadd.f32 0.0, %v480
  %482 = vmatmul.bf16.gmra.mxu0 %v323
  %v483 = vpop.f32.mrf.mxu0
  %v484 = vadd.f32 0.0, %v483
  %v485 = vpop.f32.mrf.mxu0
  %v486 = vadd.f32 0.0, %v485
  %487 = vmatmul.bf16.gmra.mxu0 %v326
  %v488 = vpop.f32.mrf.mxu0
  %v489 = vadd.f32 0.0, %v488
  %v490 = vpop.f32.mrf.mxu0
  %v491 = vadd.f32 0.0, %v490
  %492 = vmatmul.bf16.gmra.mxu0 %v329
  %v493 = vpop.f32.mrf.mxu0
  %v494 = vadd.f32 0.0, %v493
  %v495 = vpop.f32.mrf.mxu0
  %v496 = vadd.f32 0.0, %v495
  %497 = vmatmul.bf16.gmra.mxu0 %v332
  %v498 = vpop.f32.mrf.mxu0
  %v499 = vadd.f32 0.0, %v498
  %v500 = vpop.f32.mrf.mxu0
  %v501 = vadd.f32 0.0, %v500
  %502 = vmatmul.bf16.gmra.mxu0 %v335
  %v503 = vpop.f32.mrf.mxu0
  %v504 = vadd.f32 0.0, %v503
  %v505 = vpop.f32.mrf.mxu0
  %v506 = vadd.f32 0.0, %v505
  %507 = vmatmul.bf16.gmra.mxu0 %v338
  %v508 = vpop.f32.mrf.mxu0
  %v509 = vadd.f32 0.0, %v508
  %v510 = vpop.f32.mrf.mxu0
  %v511 = vadd.f32 0.0, %v510
  %512 = vdwg.mxu0
  %v513 = vld [vmem:[%s2] sm:$0xff]
  %v514 = vld [vmem:[%s2 + $0x8] sm:$0xff]
  %v515 = vld [vmem:[%s2 + $0x10] sm:$0xff]
  %v516 = vld [vmem:[%s2 + $0x18] sm:$0xff]
  %v517 = vld [vmem:[%s2 + $0x20] sm:$0xff]
  %v518 = vld [vmem:[%s2 + $0x28] sm:$0xff]
  %v519 = vld [vmem:[%s2 + $0x30] sm:$0xff]
  %v520 = vld [vmem:[%s2 + $0x38] sm:$0xff]
  %v521 = vld [vmem:[%s2 + $0x40] sm:$0xff]
  %v522 = vld [vmem:[%s2 + $0x48] sm:$0xff]
  %v523 = vld [vmem:[%s2 + $0x50] sm:$0xff]
  %v524 = vld [vmem:[%s2 + $0x58] sm:$0xff]
  %v525 = vld [vmem:[%s2 + $0x60] sm:$0xff]
  %v526 = vld [vmem:[%s2 + $0x68] sm:$0xff]
  %v527 = vld [vmem:[%s2 + $0x70] sm:$0xff]
  %v528 = vld [vmem:[%s2 + $0x78] sm:$0xff]
  %v529 = vld [vmem:[%s3] sm:$0x1]
  %v531 = vperm.slane %v529, 0
  %533 = vmatpush.msra.mxu0 %v528
  %534 = vmatpush.msra.mxu0 %v527
  %535 = vmatpush.msra.mxu0 %v526
  %536 = vmatpush.msra.mxu0 %v525
  %537 = vmatpush.msra.mxu0 %v524
  %538 = vmatpush.msra.mxu0 %v523
  %539 = vmatpush.msra.mxu0 %v522
  %540 = vmatpush.msra.mxu0 %v521
  %541 = vmatpush.msra.mxu0 %v520
  %542 = vmatpush.msra.mxu0 %v519
  %543 = vmatpush.msra.mxu0 %v518
  %544 = vmatpush.msra.mxu0 %v517
  %545 = vmatpush.msra.mxu0 %v516
  %546 = vmatpush.msra.mxu0 %v515
  %547 = vmatpush.msra.mxu0 %v514
  %548 = vmatpush.msra.mxu0 %v513
  %549 = vmatmul.f32.gmra.mxu0 %v354
  %v550 = vpop.f32.mrf.mxu0
  %v551 = vadd.f32 %v531, %v550
  %552 = vmatmul.f32.gmra.mxu0 %v356
  %v553 = vpop.f32.mrf.mxu0
  %v554 = vadd.f32 %v531, %v553
  %555 = vmatmul.f32.gmra.mxu0 %v359
  %v556 = vpop.f32.mrf.mxu0
  %v557 = vadd.f32 %v531, %v556
  %558 = vmatmul.f32.gmra.mxu0 %v361
  %v559 = vpop.f32.mrf.mxu0
  %v560 = vadd.f32 %v531, %v559
  %561 = vmatmul.f32.gmra.mxu0 %v364
  %v562 = vpop.f32.mrf.mxu0
  %v563 = vadd.f32 %v531, %v562
  %564 = vmatmul.f32.gmra.mxu0 %v366
  %v565 = vpop.f32.mrf.mxu0
  %v566 = vadd.f32 %v531, %v565
  %567 = vmatmul.f32.gmra.mxu0 %v369
  %v568 = vpop.f32.mrf.mxu0
  %v569 = vadd.f32 %v531, %v568
  %570 = vmatmul.f32.gmra.mxu0 %v371
  %v571 = vpop.f32.mrf.mxu0
  %v572 = vadd.f32 %v531, %v571
  %573 = vmatmul.f32.gmra.mxu0 %v374
  %v574 = vpop.f32.mrf.mxu0
  %v575 = vadd.f32 %v531, %v574
  %576 = vmatmul.f32.gmra.mxu0 %v376
  %v577 = vpop.f32.mrf.mxu0
  %v578 = vadd.f32 %v531, %v577
  %579 = vmatmul.f32.gmra.mxu0 %v379
  %v580 = vpop.f32.mrf.mxu0
  %v581 = vadd.f32 %v531, %v580
  %582 = vmatmul.f32.gmra.mxu0 %v381
  %v583 = vpop.f32.mrf.mxu0
  %v584 = vadd.f32 %v531, %v583
  %585 = vmatmul.f32.gmra.mxu0 %v384
  %v586 = vpop.f32.mrf.mxu0
  %v587 = vadd.f32 %v531, %v586
  %588 = vmatmul.f32.gmra.mxu0 %v386
  %v589 = vpop.f32.mrf.mxu0
  %v590 = vadd.f32 %v531, %v589
  %591 = vmatmul.f32.gmra.mxu0 %v389
  %v592 = vpop.f32.mrf.mxu0
  %v593 = vadd.f32 %v531, %v592
  %594 = vmatmul.f32.gmra.mxu0 %v391
  %v595 = vpop.f32.mrf.mxu0
  %v596 = vadd.f32 %v531, %v595
  %597 = vmatmul.f32.gmra.mxu0 %v394
  %v598 = vpop.f32.mrf.mxu0
  %v599 = vadd.f32 %v531, %v598
  %600 = vmatmul.f32.gmra.mxu0 %v396
  %v601 = vpop.f32.mrf.mxu0
  %v602 = vadd.f32 %v531, %v601
  %603 = vmatmul.f32.gmra.mxu0 %v399
  %v604 = vpop.f32.mrf.mxu0
  %v605 = vadd.f32 %v531, %v604
  %606 = vmatmul.f32.gmra.mxu0 %v401
  %v607 = vpop.f32.mrf.mxu0
  %v608 = vadd.f32 %v531, %v607
  %609 = vmatmul.f32.gmra.mxu0 %v404
  %v610 = vpop.f32.mrf.mxu0
  %v611 = vadd.f32 %v531, %v610
  %612 = vmatmul.f32.gmra.mxu0 %v406
  %v613 = vpop.f32.mrf.mxu0
  %v614 = vadd.f32 %v531, %v613
  %615 = vmatmul.f32.gmra.mxu0 %v409
  %v616 = vpop.f32.mrf.mxu0
  %v617 = vadd.f32 %v531, %v616
  %618 = vmatmul.f32.gmra.mxu0 %v411
  %v619 = vpop.f32.mrf.mxu0
  %v620 = vadd.f32 %v531, %v619
  %621 = vmatmul.f32.gmra.mxu0 %v414
  %v622 = vpop.f32.mrf.mxu0
  %v623 = vadd.f32 %v531, %v622
  %624 = vmatmul.f32.gmra.mxu0 %v416
  %v625 = vpop.f32.mrf.mxu0
  %v626 = vadd.f32 %v531, %v625
  %627 = vmatmul.f32.gmra.mxu0 %v419
  %v628 = vpop.f32.mrf.mxu0
  %v629 = vadd.f32 %v531, %v628
  %630 = vmatmul.f32.gmra.mxu0 %v421
  %v631 = vpop.f32.mrf.mxu0
  %v632 = vadd.f32 %v531, %v631
  %633 = vmatmul.f32.gmra.mxu0 %v424
  %v634 = vpop.f32.mrf.mxu0
  %v635 = vadd.f32 %v531, %v634
  %636 = vmatmul.f32.gmra.mxu0 %v426
  %v637 = vpop.f32.mrf.mxu0
  %v638 = vadd.f32 %v531, %v637
  %639 = vmatmul.f32.gmra.mxu0 %v429
  %v640 = vpop.f32.mrf.mxu0
  %v641 = vadd.f32 %v531, %v640
  %642 = vmatmul.f32.gmra.mxu0 %v431
  %v643 = vpop.f32.mrf.mxu0
  %v644 = vadd.f32 %v531, %v643
  %645 = vmatmul.f32.gmra.mxu0 %v434
  %v646 = vpop.f32.mrf.mxu0
  %v647 = vadd.f32 %v531, %v646
  %648 = vmatmul.f32.gmra.mxu0 %v436
  %v649 = vpop.f32.mrf.mxu0
  %v650 = vadd.f32 %v531, %v649
  %651 = vmatmul.f32.gmra.mxu0 %v439
  %v652 = vpop.f32.mrf.mxu0
  %v653 = vadd.f32 %v531, %v652
  %654 = vmatmul.f32.gmra.mxu0 %v441
  %v655 = vpop.f32.mrf.mxu0
  %v656 = vadd.f32 %v531, %v655
  %657 = vmatmul.f32.gmra.mxu0 %v444
  %v658 = vpop.f32.mrf.mxu0
  %v659 = vadd.f32 %v531, %v658
  %660 = vmatmul.f32.gmra.mxu0 %v446
  %v661 = vpop.f32.mrf.mxu0
  %v662 = vadd.f32 %v531, %v661
  %663 = vmatmul.f32.gmra.mxu0 %v449
  %v664 = vpop.f32.mrf.mxu0
  %v665 = vadd.f32 %v531, %v664
  %666 = vmatmul.f32.gmra.mxu0 %v451
  %v667 = vpop.f32.mrf.mxu0
  %v668 = vadd.f32 %v531, %v667
  %669 = vmatmul.f32.gmra.mxu0 %v454
  %v670 = vpop.f32.mrf.mxu0
  %v671 = vadd.f32 %v531, %v670
  %672 = vmatmul.f32.gmra.mxu0 %v456
  %v673 = vpop.f32.mrf.mxu0
  %v674 = vadd.f32 %v531, %v673
  %675 = vmatmul.f32.gmra.mxu0 %v459
  %v676 = vpop.f32.mrf.mxu0
  %v677 = vadd.f32 %v531, %v676
  %678 = vmatmul.f32.gmra.mxu0 %v461
  %v679 = vpop.f32.mrf.mxu0
  %v680 = vadd.f32 %v531, %v679
  %681 = vmatmul.f32.gmra.mxu0 %v464
  %v682 = vpop.f32.mrf.mxu0
  %v683 = vadd.f32 %v531, %v682
  %684 = vmatmul.f32.gmra.mxu0 %v466
  %v685 = vpop.f32.mrf.mxu0
  %v686 = vadd.f32 %v531, %v685
  %687 = vmatmul.f32.gmra.mxu0 %v469
  %v688 = vpop.f32.mrf.mxu0
  %v689 = vadd.f32 %v531, %v688
  %690 = vmatmul.f32.gmra.mxu0 %v471
  %v691 = vpop.f32.mrf.mxu0
  %v692 = vadd.f32 %v531, %v691
  %693 = vmatmul.f32.gmra.mxu0 %v474
  %v694 = vpop.f32.mrf.mxu0
  %v695 = vadd.f32 %v531, %v694
  %696 = vmatmul.f32.gmra.mxu0 %v476
  %v697 = vpop.f32.mrf.mxu0
  %v698 = vadd.f32 %v531, %v697
  %699 = vmatmul.f32.gmra.mxu0 %v479
  %v700 = vpop.f32.mrf.mxu0
  %v701 = vadd.f32 %v531, %v700
  %702 = vmatmul.f32.gmra.mxu0 %v481
  %v703 = vpop.f32.mrf.mxu0
  %v704 = vadd.f32 %v531, %v703
  %705 = vmatmul.f32.gmra.mxu0 %v484
  %v706 = vpop.f32.mrf.mxu0
  %v707 = vadd.f32 %v531, %v706
  %708 = vmatmul.f32.gmra.mxu0 %v486
  %v709 = vpop.f32.mrf.mxu0
  %v710 = vadd.f32 %v531, %v709
  %711 = vmatmul.f32.gmra.mxu0 %v489
  %v712 = vpop.f32.mrf.mxu0
  %v713 = vadd.f32 %v531, %v712
  %714 = vmatmul.f32.gmra.mxu0 %v491
  %v715 = vpop.f32.mrf.mxu0
  %v716 = vadd.f32 %v531, %v715
  %717 = vmatmul.f32.gmra.mxu0 %v494
  %v718 = vpop.f32.mrf.mxu0
  %v719 = vadd.f32 %v531, %v718
  %720 = vmatmul.f32.gmra.mxu0 %v496
  %v721 = vpop.f32.mrf.mxu0
  %v722 = vadd.f32 %v531, %v721
  %723 = vmatmul.f32.gmra.mxu0 %v499
  %v724 = vpop.f32.mrf.mxu0
  %v725 = vadd.f32 %v531, %v724
  %726 = vmatmul.f32.gmra.mxu0 %v501
  %v727 = vpop.f32.mrf.mxu0
  %v728 = vadd.f32 %v531, %v727
  %729 = vmatmul.f32.gmra.mxu0 %v504
  %v730 = vpop.f32.mrf.mxu0
  %v731 = vadd.f32 %v531, %v730
  %732 = vmatmul.f32.gmra.mxu0 %v506
  %v733 = vpop.f32.mrf.mxu0
  %v734 = vadd.f32 %v531, %v733
  %735 = vmatmul.f32.gmra.mxu0 %v509
  %v736 = vpop.f32.mrf.mxu0
  %v737 = vadd.f32 %v531, %v736
  %738 = vmatmul.f32.gmra.mxu0 %v511
  %v739 = vpop.f32.mrf.mxu0
  %v740 = vadd.f32 %v531, %v739
  %741 = vdwg.mxu0
  %742 = vst.msk [vmem:[%s4] sm:$0xff] %vm243, %v551
  %743 = vst.msk [vmem:[%s4 + $0x8] sm:$0xff] %vm243, %v554
  %744 = vst.msk [vmem:[%s4 + $0x10] sm:$0xff] %vm243, %v557
  %745 = vst.msk [vmem:[%s4 + $0x18] sm:$0xff] %vm243, %v560
  %746 = vst.msk [vmem:[%s4 + $0x20] sm:$0xff] %vm243, %v563
  %747 = vst.msk [vmem:[%s4 + $0x28] sm:$0xff] %vm243, %v566
  %748 = vst.msk [vmem:[%s4 + $0x30] sm:$0xff] %vm243, %v569
  %749 = vst.msk [vmem:[%s4 + $0x38] sm:$0xff] %vm243, %v572
  %750 = vst.msk [vmem:[%s4 + $0x40] sm:$0xff] %vm243, %v575
  %751 = vst.msk [vmem:[%s4 + $0x48] sm:$0xff] %vm243, %v578
  %752 = vst.msk [vmem:[%s4 + $0x50] sm:$0xff] %vm243, %v581
  %753 = vst.msk [vmem:[%s4 + $0x58] sm:$0xff] %vm243, %v584
  %754 = vst.msk [vmem:[%s4 + $0x60] sm:$0xff] %vm243, %v587
  %755 = vst.msk [vmem:[%s4 + $0x68] sm:$0xff] %vm243, %v590
  %756 = vst.msk [vmem:[%s4 + $0x70] sm:$0xff] %vm243, %v593
  %757 = vst.msk [vmem:[%s4 + $0x78] sm:$0xff] %vm243, %v596
  %758 = vst.msk [vmem:[%s4 + $0x80] sm:$0xff] %vm243, %v599
  %759 = vst.msk [vmem:[%s4 + $0x88] sm:$0xff] %vm243, %v602
  %760 = vst.msk [vmem:[%s4 + $0x90] sm:$0xff] %vm243, %v605
  %761 = vst.msk [vmem:[%s4 + $0x98] sm:$0xff] %vm243, %v608
  %762 = vst.msk [vmem:[%s4 + $0xa0] sm:$0xff] %vm243, %v611
  %763 = vst.msk [vmem:[%s4 + $0xa8] sm:$0xff] %vm243, %v614
  %764 = vst.msk [vmem:[%s4 + $0xb0] sm:$0xff] %vm243, %v617
  %765 = vst.msk [vmem:[%s4 + $0xb8] sm:$0xff] %vm243, %v620
  %766 = vst.msk [vmem:[%s4 + $0xc0] sm:$0xff] %vm243, %v623
  %767 = vst.msk [vmem:[%s4 + $0xc8] sm:$0xff] %vm243, %v626
  %768 = vst.msk [vmem:[%s4 + $0xd0] sm:$0xff] %vm243, %v629
  %769 = vst.msk [vmem:[%s4 + $0xd8] sm:$0xff] %vm243, %v632
  %770 = vst.msk [vmem:[%s4 + $0xe0] sm:$0xff] %vm243, %v635
  %771 = vst.msk [vmem:[%s4 + $0xe8] sm:$0xff] %vm243, %v638
  %772 = vst.msk [vmem:[%s4 + $0xf0] sm:$0xff] %vm243, %v641
  %773 = vst.msk [vmem:[%s4 + $0xf8] sm:$0xff] %vm243, %v644
  %774 = vst.msk [vmem:[%s4 + $0x100] sm:$0xff] %vm243, %v647
  %775 = vst.msk [vmem:[%s4 + $0x108] sm:$0xff] %vm243, %v650
  %776 = vst.msk [vmem:[%s4 + $0x110] sm:$0xff] %vm243, %v653
  %777 = vst.msk [vmem:[%s4 + $0x118] sm:$0xff] %vm243, %v656
  %778 = vst.msk [vmem:[%s4 + $0x120] sm:$0xff] %vm243, %v659
  %779 = vst.msk [vmem:[%s4 + $0x128] sm:$0xff] %vm243, %v662
  %780 = vst.msk [vmem:[%s4 + $0x130] sm:$0xff] %vm243, %v665
  %781 = vst.msk [vmem:[%s4 + $0x138] sm:$0xff] %vm243, %v668
  %782 = vst.msk [vmem:[%s4 + $0x140] sm:$0xff] %vm243, %v671
  %783 = vst.msk [vmem:[%s4 + $0x148] sm:$0xff] %vm243, %v674
  %784 = vst.msk [vmem:[%s4 + $0x150] sm:$0xff] %vm243, %v677
  %785 = vst.msk [vmem:[%s4 + $0x158] sm:$0xff] %vm243, %v680
  %786 = vst.msk [vmem:[%s4 + $0x160] sm:$0xff] %vm243, %v683
  %787 = vst.msk [vmem:[%s4 + $0x168] sm:$0xff] %vm243, %v686
  %788 = vst.msk [vmem:[%s4 + $0x170] sm:$0xff] %vm243, %v689
  %789 = vst.msk [vmem:[%s4 + $0x178] sm:$0xff] %vm243, %v692
  %790 = vst.msk [vmem:[%s4 + $0x180] sm:$0xff] %vm243, %v695
  %791 = vst.msk [vmem:[%s4 + $0x188] sm:$0xff] %vm243, %v698
  %792 = vst.msk [vmem:[%s4 + $0x190] sm:$0xff] %vm243, %v701
  %793 = vst.msk [vmem:[%s4 + $0x198] sm:$0xff] %vm243, %v704
  %794 = vst.msk [vmem:[%s4 + $0x1a0] sm:$0xff] %vm243, %v707
  %795 = vst.msk [vmem:[%s4 + $0x1a8] sm:$0xff] %vm243, %v710
  %796 = vst.msk [vmem:[%s4 + $0x1b0] sm:$0xff] %vm243, %v713
  %797 = vst.msk [vmem:[%s4 + $0x1b8] sm:$0xff] %vm243, %v716
  %798 = vst.msk [vmem:[%s4 + $0x1c0] sm:$0xff] %vm243, %v719
  %799 = vst.msk [vmem:[%s4 + $0x1c8] sm:$0xff] %vm243, %v722
  %800 = vst.msk [vmem:[%s4 + $0x1d0] sm:$0xff] %vm243, %v725
  %801 = vst.msk [vmem:[%s4 + $0x1d8] sm:$0xff] %vm243, %v728
  %802 = vst.msk [vmem:[%s4 + $0x1e0] sm:$0xff] %vm243, %v731
  %803 = vst.msk [vmem:[%s4 + $0x1e8] sm:$0xff] %vm243, %v734
  %804 = vst.msk [vmem:[%s4 + $0x1f0] sm:$0xff] %vm243, %v737
  %805 = vst.msk [vmem:[%s4 + $0x1f8] sm:$0xff] %vm243, %v740
  // Predicated region
  $region18: #{lora_block.1} parent=0 // pred_check
    _
  $region19: #{lora_block.1} parent=0 // pred_check_branch
    %807 = sbr.rel (0) target = $region21
  $region20: #{lora_block.1} parent=0 // pred_region
    _
  $region21: #{lora_block.1} parent=0 // pred_fallthru
    _
  // Predicated region
  $region22: #{lora_block.1} parent=0 // pred_check
    _
  $region23: #{lora_block.1} parent=0 // pred_check_branch
    %809 = sbr.rel (0) target = $region25
  $region24: #{lora_block.1} parent=0 // pred_region
    _
  $region25: #{lora_block.1} parent=0 // pred_fallthru
    _

</llo_original>
